<compile_context>
chip_gen: v5e
topology: v5e:2x2
jax: 0.10.0
libtpu: 0.0.40
codegen_flags: <defaults>
</compile_context>

<pallas_src>
import functools

import jax
import jax.numpy as jnp
from jax.experimental import pallas as pl
from jax.experimental.pallas import tpu as pltpu


def _round_up(x, m):
    return ((x + m - 1) // m) * m


def _largest_divisor_leq(n, cap):
    cap = max(1, min(n, cap))
    for d in range(cap, 0, -1):
        if n % d == 0:
            return d
    return 1


def _matching_loss_kernel(pred_ref, targ_ref, out_ref, *,
                          loss_type, tile_rows, valid_rows, mask_rows):
    r = pl.program_id(1)

    @pl.when(r == 0)
    def _():
        out_ref[...] = jnp.zeros_like(out_ref)

    p = pred_ref[...].astype(jnp.float32)          # (Bt, tile_rows, 128)
    t = targ_ref[...].astype(jnp.float32)
    d = p - t
    if loss_type == "l1":
        val = jnp.abs(d)
    else:                                          # 'l2' -> mse
        val = d * d

    if mask_rows:
        # Only the last row tile can overhang the real data; zero the
        # garbage rows with a tile-local row iota vs. remaining valid rows.
        rem = valid_rows - r * tile_rows
        row = jax.lax.broadcasted_iota(jnp.int32, val.shape, 1)
        val = jnp.where(row < rem, val, 0.0)

    # Lane-wide per-sample partial sums, resident in the output block across
    # the reduction (row-tile) axis.
    out_ref[...] += val.sum(axis=1, keepdims=True)  # (Bt, 1, 128)


def matching_loss(predict, target, weights=None, *, loss_type="l1",
                  is_weighted=False, target_block_bytes=2 * 1024 * 1024):
    """Pallas implementation of MatchingLoss.forward.

    predict, target: (B, C, H, W) arrays (NCHW, as in the PyTorch module).
    weights:         optional (B,) array, used only if is_weighted.
    Returns a scalar float32 identical to the PyTorch module (up to f32
    summation order).
    """
    if loss_type not in ("l1", "l2"):
        raise ValueError(f"invalid loss type {loss_type}")
    if predict.shape != target.shape:
        raise ValueError("predict/target shape mismatch")

    B = predict.shape[0]
    F = 1
    for d in predict.shape[1:]:
        F *= d

    pred2d = predict.reshape(B, F)
    targ2d = target.reshape(B, F)

    # Pad only when F is not lane-aligned, and only to the NEXT multiple of
    # 128.  Zeros in both operands add nothing to the l1/l2 sums; the true F
    # is used as the divisor in the epilogue.
    Fp = _round_up(F, 128)
    if Fp != F:
        pad = Fp - F
        pred2d = jnp.pad(pred2d, ((0, 0), (0, pad)))
        targ2d = jnp.pad(targ2d, ((0, 0), (0, pad)))

    F128 = Fp // 128
    pred3d = pred2d.reshape(B, F128, 128)    # free, contiguous reshapes
    targ3d = targ2d.reshape(B, F128, 128)

    itemsize = pred3d.dtype.itemsize
    pack = max(8, 32 // itemsize)            # dense sublane pack per dtype
    row_bytes = 128 * itemsize
    sample_bytes = F128 * row_bytes

    if sample_bytes >= target_block_bytes and F128 >= pack:
        # Large samples: one sample per step, tile the feature rows so each
        # input block is ~target_block_bytes (tile_rows multiple of pack).
        bt = 1
        rows = max(pack, (target_block_bytes // row_bytes) // pack * pack)
        tile_rows = min(rows, _round_up(F128, pack))
    else:
        # Small samples: whole sample per step; block several batch samples
        # together so each grid step still moves ~target_block_bytes.
        bt = _largest_divisor_leq(B, max(1, target_block_bytes // sample_bytes))
        tile_rows = F128                     # full dim -> always legal block

    n_row_tiles = pl.cdiv(F128, tile_rows)
    mask_rows = (F128 % tile_rows) != 0

    kernel = functools.partial(
        _matching_loss_kernel, loss_type=loss_type, tile_rows=tile_rows,
        valid_rows=F128, mask_rows=mask_rows)

    sums = pl.pallas_call(
        kernel,
        out_shape=jax.ShapeDtypeStruct((B, 1, 128), jnp.float32),
        grid_spec=pltpu.PrefetchScalarGridSpec(
            num_scalar_prefetch=0,
            grid=(B // bt, n_row_tiles),
            in_specs=[
                pl.BlockSpec((bt, tile_rows, 128), lambda b, r: (b, r, 0)),
                pl.BlockSpec((bt, tile_rows, 128), lambda b, r: (b, r, 0)),
            ],
            out_specs=pl.BlockSpec((bt, 1, 128), lambda b, r: (b, 0, 0)),
        ),
        compiler_params=pltpu.CompilerParams(
            dimension_semantics=("parallel", "arbitrary"),
            vmem_limit_bytes=32 * 1024 * 1024),
    )(pred3d, targ3d)

    # Cheap epilogue in plain JAX: lane reduce, per-batch mean, weighting, mean.
    per_b = sums.reshape(B, 128).sum(axis=1) / jnp.float32(F)
    if is_weighted and weights is not None:
        per_b = weights.astype(jnp.float32) * per_b
    return per_b.mean()


def _reference(predict, target, weights=None, *, loss_type="l1",
               is_weighted=False):
    """Pure-JAX reference mirroring the PyTorch module (f32 math)."""
    p = predict.astype(jnp.float32)
    t = target.astype(jnp.float32)
    if loss_type == "l1":
        loss = jnp.abs(p - t)
    else:
        loss = (p - t) ** 2
    B = predict.shape[0]
    loss = loss.reshape(B, -1).mean(axis=1)
    if is_weighted and weights is not None:
        loss = weights.astype(jnp.float32) * loss
    return loss.mean()


def _check(name, out, ref, atol=1e-5, rtol=1e-5):
    out = jax.block_until_ready(out)
    ok = bool(jnp.allclose(out, ref, rtol=rtol, atol=atol))
    if not ok:
        print(f"MISMATCH {name}: {out} vs {ref}")
    return ok


if __name__ == "__main__":
    key = jax.random.PRNGKey(0)
    k1, k2, k3, k4, k5 = jax.random.split(key, 5)

    ok = True

    # 1) Main shape (F % 128 == 0, batch-blocked path): B=2, C=4, H=W=16.
    B, C, H, W = 2, 4, 16, 16
    predict = jax.random.normal(k1, (B, C, H, W), dtype=jnp.float32)
    target = jax.random.normal(k2, (B, C, H, W), dtype=jnp.float32)
    weights = jax.random.uniform(k3, (B,), dtype=jnp.float32)
    for loss_type in ("l1", "l2"):
        for is_weighted in (False, True):
            out = matching_loss(predict, target, weights,
                                loss_type=loss_type, is_weighted=is_weighted)
            ref = _reference(predict, target, weights,
                             loss_type=loss_type, is_weighted=is_weighted)
            ok &= _check(f"main {loss_type} w={is_weighted}", out, ref)

    # 2) Padding path (F = 300 -> padded to 384 lanes).
    p2 = jax.random.normal(k4, (2, 3, 10, 10), dtype=jnp.float32)
    t2 = jax.random.normal(k5, (2, 3, 10, 10), dtype=jnp.float32)
    for loss_type in ("l1", "l2"):
        out = matching_loss(p2, t2, weights, loss_type=loss_type,
                            is_weighted=True)
        ref = _reference(p2, t2, weights, loss_type=loss_type,
                         is_weighted=True)
        ok &= _check(f"pad {loss_type}", out, ref)

    # 3) Row-mask path (F128=24, tile_rows=16 forced by a tiny block target).
    p3 = jax.random.normal(k1, (2, 3, 32, 32), dtype=jnp.float32)
    t3 = jax.random.normal(k2, (2, 3, 32, 32), dtype=jnp.float32)
    out = matching_loss(p3, t3, None, loss_type="l2", is_weighted=False,
                        target_block_bytes=8192)
    ref = _reference(p3, t3, None, loss_type="l2", is_weighted=False)
    ok &= _check("rowmask l2", out, ref)

    # 4) Native bf16 streaming (cast to f32 inside the kernel).
    pb = predict.astype(jnp.bfloat16)
    tb = target.astype(jnp.bfloat16)
    out = matching_loss(pb, tb, weights, loss_type="l1", is_weighted=True)
    ref = _reference(pb, tb, weights, loss_type="l1", is_weighted=True)
    ok &= _check("bf16 l1", out, ref)

    if ok:
        print("KERNEL_OK")
</pallas_src>

<mosaic_0001>
module attributes {stable_mosaic.version = 11 : i64} {
  func.func @_matching_loss_kernel(%arg0: i32, %arg1: i32, %arg2: memref<2x8x128xf32, #tpu.memory_space<vmem>>, %arg3: memref<2x8x128xf32, #tpu.memory_space<vmem>>, %arg4: memref<2x1x128xf32, #tpu.memory_space<vmem>>) attributes {dimension_semantics = [#tpu.dimension_semantics<parallel>, #tpu.dimension_semantics<arbitrary>], iteration_bounds = array<i64: 1, 1>, scalar_prefetch = 0 : i64, scratch_operands = 0 : i64, tpu.core_type = #tpu.core_type<tc>, window_params = [{transform_indices = @transform_0, window_bounds = array<i64: 2, 8, 128>}, {transform_indices = @transform_1, window_bounds = array<i64: 2, 8, 128>}, {transform_indices = @transform_2, window_bounds = array<i64: 2, 1, 128>}]} {
    %c0_i32 = arith.constant 0 : i32
    %0 = arith.cmpi eq, %arg1, %c0_i32 : i32
    %1 = arith.extui %0 : i1 to i32
    %c0_i32_0 = arith.constant 0 : i32
    %2 = arith.cmpi ne, %1, %c0_i32_0 : i32
    scf.if %2 {
      %cst_12 = arith.constant 0.000000e+00 : f32
      %12 = vector.broadcast %cst_12 : f32 to vector<2x1x128xf32>
      %c0_13 = arith.constant 0 : index
      %c0_14 = arith.constant 0 : index
      %c0_15 = arith.constant 0 : index
      %13 = vector.load %arg4[%c0_13, %c0_14, %c0_15] : memref<2x1x128xf32, #tpu.memory_space<vmem>>, vector<2x1x128xf32>
      tpu.vector_store %arg4[%c0_13, %c0_14, %c0_15], %12 {strides = array<i32>} : memref<2x1x128xf32, #tpu.memory_space<vmem>>, vector<2x1x128xf32>,
    } else {
    }
    %c0 = arith.constant 0 : index
    %c0_1 = arith.constant 0 : index
    %c0_2 = arith.constant 0 : index
    %3 = vector.load %arg2[%c0, %c0_1, %c0_2] : memref<2x8x128xf32, #tpu.memory_space<vmem>>, vector<2x8x128xf32>
    %c0_3 = arith.constant 0 : index
    %c0_4 = arith.constant 0 : index
    %c0_5 = arith.constant 0 : index
    %4 = vector.load %arg3[%c0_3, %c0_4, %c0_5] : memref<2x8x128xf32, #tpu.memory_space<vmem>>, vector<2x8x128xf32>
    %5 = arith.subf %3, %4 : vector<2x8x128xf32>
    %6 = math.absf %5 : vector<2x8x128xf32>
    %c0_6 = arith.constant 0 : index
    %c0_7 = arith.constant 0 : index
    %c0_8 = arith.constant 0 : index
    %7 = vector.load %arg4[%c0_6, %c0_7, %c0_8] : memref<2x1x128xf32, #tpu.memory_space<vmem>>, vector<2x1x128xf32>
    %cst = arith.constant dense<0.000000e+00> : vector<2x128xf32>
    %8 = vector.multi_reduction <add>, %6, %cst [1] : vector<2x8x128xf32> to vector<2x128xf32>
    %9 = vector.shape_cast %8 : vector<2x128xf32> to vector<2x1x128xf32>
    %10 = arith.addf %7, %9 : vector<2x1x128xf32>
    %c0_9 = arith.constant 0 : index
    %c0_10 = arith.constant 0 : index
    %c0_11 = arith.constant 0 : index
    %11 = vector.load %arg4[%c0_9, %c0_10, %c0_11] : memref<2x1x128xf32, #tpu.memory_space<vmem>>, vector<2x1x128xf32>
    tpu.vector_store %arg4[%c0_9, %c0_10, %c0_11], %10 {strides = array<i32>} : memref<2x1x128xf32, #tpu.memory_space<vmem>>, vector<2x1x128xf32>,
    return
  }
  func.func @transform_0(%arg0: i32, %arg1: i32) -> (i32, i32, i32) {
    %c0_i32 = arith.constant 0 : i32
    %c0_i32_0 = arith.constant 0 : i32
    return %arg0, %arg1, %c0_i32 : i32, i32, i32
  }
  func.func @transform_1(%arg0: i32, %arg1: i32) -> (i32, i32, i32) {
    %c0_i32 = arith.constant 0 : i32
    %c0_i32_0 = arith.constant 0 : i32
    return %arg0, %arg1, %c0_i32 : i32, i32, i32
  }
  func.func @transform_2(%arg0: i32, %arg1: i32) -> (i32, i32, i32) {
    %c0_i32 = arith.constant 0 : i32
    %c0_i32_0 = arith.constant 0 : i32
    %c0_i32_1 = arith.constant 0 : i32
    return %arg0, %c0_i32, %c0_i32_0 : i32, i32, i32
  }
}

</mosaic_0001>

<llo_original>
// kernel: tpu_custom_call.1
$region0: #{tpu_custom_call.1}
  #allocation0 [shape = 'u32[]', space=smem, size = 0x4, offset = 0x4, fixed_abs, tag = 'smem constant byte address 0x4 - core index']
  #allocation1 [shape = 'u32[72,128]{1,0:T(1,128)}', space=vmem, size = 0x9000, scoped, tag = 'internal scratch']
  %s0 = inlined_call_operand.hbm [shape: f32[2,8,128], index: 0, kind: input, shape index: {}]
  %s1 = inlined_call_operand.hbm [shape: f32[2,8,128], index: 1, kind: input, shape index: {}]
  %s2 = inlined_call_operand.hbm [shape: f32[2,1,128], index: 2, kind: output, shape index: {}]
  %s3 = sld [smem:[#allocation0]]
  $region30: #{tpu_custom_call.1} parent=0
    _
  %s5 = ssub.s32 1, %s3
  %s6 = scalar_select 0, %s5, %s3
  $region1: #{tpu_custom_call.1} parent=0
    #allocation2 [shape = 'u8[8192]{0}', space=vmem, size = 0x2000, scoped, tag = 'input window, operand 0, single buffered']
    #allocation3 [shape = 's32[1]{0}', space=sflag, size = 0x4, scoped, tag = 'scoped memory for tpu_custom_call.1']
    #allocation4 [shape = 's32[1]{0}', space=sflag, size = 0x4, scoped, tag = 'scoped memory for tpu_custom_call.1']
    #allocation5 [shape = 'u8[8192]{0}', space=vmem, size = 0x2000, scoped, tag = 'input window, operand 1, single buffered']
    #allocation6 [shape = 's32[1]{0}', space=sflag, size = 0x4, scoped, tag = 'scoped memory for tpu_custom_call.1']
    #allocation7 [shape = 'u8[1024]{0}', space=vmem, size = 0x400, scoped, tag = 'output window, operand 0, single buffered']
    %7 = vsyncpa [#allocation3], 0
    %8 = vsyncpa [#allocation6], 0
    %9 = vsyncpa [#allocation4], 0
    // Predicated region
    $region2: #{tpu_custom_call.1} parent=1 // pred_check
      _
    $region3: #{tpu_custom_call.1} parent=1 // pred_check_branch
      %11 = sbr.rel (0) target = $region5
    $region4: #{tpu_custom_call.1} parent=1 // pred_region
      %13 = vsyncadd [#allocation3], 0
      %s14 = sshll.u32 %s0, 4
      %s15 = int_to_ptr.hbm [resolvable:$true] %s14
      %s16 = sshll.u32 [#allocation2], 4
      %s17 = int_to_ptr.vmem [resolvable:$true] %s16
      %22 = dma.hbm_to_vmem [thread:$0]  %s15, 256, %s17, [#allocation3], 128, 128, 8
    $region5: #{tpu_custom_call.1} parent=1 // pred_fallthru
      _
    // Predicated region
    $region6: #{tpu_custom_call.1} parent=1 // pred_check
      _
    $region7: #{tpu_custom_call.1} parent=1 // pred_check_branch
      %24 = sbr.rel (0) target = $region9
    $region8: #{tpu_custom_call.1} parent=1 // pred_region
      %26 = vsyncadd [#allocation6], 0
      %s27 = sshll.u32 %s1, 4
      %s28 = int_to_ptr.hbm [resolvable:$true] %s27
      %s29 = sshll.u32 [#allocation5], 4
      %s30 = int_to_ptr.vmem [resolvable:$true] %s29
      %35 = dma.hbm_to_vmem [thread:$0]  %s28, 256, %s30, [#allocation6], 128, 128, 8
    $region9: #{tpu_custom_call.1} parent=1 // pred_fallthru
      _
    // Predicated region
    $region10: #{tpu_custom_call.1} parent=1 // pred_check
      _
    $region11: #{tpu_custom_call.1} parent=1 // pred_check_branch
      %37 = sbr.rel (0) target = $region13
    $region12: #{tpu_custom_call.1} parent=1 // pred_region
      %39 = dma.done [#allocation3], 256
    $region13: #{tpu_custom_call.1} parent=1 // pred_fallthru
      _
    // Predicated region
    $region14: #{tpu_custom_call.1} parent=1 // pred_check
      _
    $region15: #{tpu_custom_call.1} parent=1 // pred_check_branch
      %41 = sbr.rel (0) target = $region17
    $region16: #{tpu_custom_call.1} parent=1 // pred_region
      %43 = dma.done [#allocation6], 256
    $region17: #{tpu_custom_call.1} parent=1 // pred_fallthru
      _
    %p44 = scmp.eq.s32.totalorder 0, 0
    // Predicated region
    $region18: #{tpu_custom_call.1} parent=1 // pred_check
      %p45 = pneg %p44
    $region19: #{tpu_custom_call.1} parent=1 // pred_check_branch
      %47 = sbr.rel (%p45) target = $region21
    $region20: #{tpu_custom_call.1} parent=1 // pred_region
      %48 = vst [vmem:[#allocation7] sm:$0x1] 0.0
      %49 = vst [vmem:[#allocation7 + $0x1] sm:$0x1] 0.0
    $region21: #{tpu_custom_call.1} parent=1 // pred_fallthru
      _
    %v50 = vld [vmem:[#allocation2] sm:$0xff]
    %v51 = vld [vmem:[#allocation2 + $0x8] sm:$0xff]
    %v52 = vld [vmem:[#allocation5] sm:$0xff]
    %v53 = vld [vmem:[#allocation5 + $0x8] sm:$0xff]
    %v54 = vsub.f32 %v50, %v52
    %v55 = vsub.f32 %v51, %v53
    %v56 = vand.u32 2147483647, %v54
    %v57 = vand.u32 2147483647, %v55
    %v58 = vld [vmem:[#allocation7] sm:$0x1]
    %v59 = vld [vmem:[#allocation7 + $0x1] sm:$0x1]
    %v60 = vrot.slane %v56, 4
    %v61 = vadd.f32 %v56, %v60
    %v62 = vrot.slane %v61, 2
    %v63 = vadd.f32 %v61, %v62
    %v64 = vrot.slane %v63, 1
    %v65 = vadd.f32 %v63, %v64
    %v66 = vrot.slane %v57, 4
    %v67 = vadd.f32 %v57, %v66
    %v68 = vrot.slane %v67, 2
    %v69 = vadd.f32 %v67, %v68
    %v70 = vrot.slane %v69, 1
    %v71 = vadd.f32 %v69, %v70
    %v72 = vadd.f32 %v58, %v65
    %v73 = vadd.f32 %v59, %v71
    %74 = vst [vmem:[#allocation7] sm:$0x1] %v72
    %75 = vst [vmem:[#allocation7 + $0x1] sm:$0x1] %v73
    // Predicated region
    $region22: #{tpu_custom_call.1} parent=1 // pred_check
      _
    $region23: #{tpu_custom_call.1} parent=1 // pred_check_branch
      %77 = sbr.rel (0) target = $region25
    $region24: #{tpu_custom_call.1} parent=1 // pred_region
      %79 = vsyncadd [#allocation4], 0
      %s80 = sshll.u32 [#allocation7], 4
      %s81 = int_to_ptr.vmem [resolvable:$true] %s80
      %s82 = sshll.u32 %s2, 4
      %s83 = int_to_ptr.hbm [resolvable:$true] %s82
      %88 = dma.vmem_to_hbm [thread:$0]  %s81, 32, %s83, [#allocation4], 16, 16, 1
    $region25: #{tpu_custom_call.1} parent=1 // pred_fallthru
      _
    // Predicated region
    $region26: #{tpu_custom_call.1} parent=1 // pred_check
      _
    $region27: #{tpu_custom_call.1} parent=1 // pred_check_branch
      %90 = sbr.rel (0) target = $region29
    $region28: #{tpu_custom_call.1} parent=1 // pred_region
      %92 = dma.done [#allocation4], 32
    $region29: #{tpu_custom_call.1} parent=1 // pred_fallthru
      _
    %93 = vsyncpa [#allocation3], 1
    %94 = vsyncpa [#allocation6], 1
    %95 = vsyncpa [#allocation4], 1

</llo_original>
